<compile_context>
chip_gen: v6e
topology: v6e:2x2x1
jax: 0.10.0
libtpu: 0.0.40
codegen_flags: <defaults>
</compile_context>

<pallas_src>
import functools

import jax
import jax.numpy as jnp
from jax.experimental import pallas as pl
from jax.experimental.pallas import tpu as pltpu


def _round_up(x, m):
    return ((x + m - 1) // m) * m


def parallel_adapter_kernel(x_ref,            # VMEM (TM, D)        row tile of x
                            wcat_ref,         # VMEM (D, D+Hp)      [Wm | W1], resident
                            bcat_ref,         # VMEM (1, D+Hp)      [bm | b1]
                            w2_ref,           # VMEM (Hp, D)        W2 * scale, resident
                            b2_ref,           # VMEM (1, D)         b2 * scale
                            o_ref):           # VMEM (TM, D)        row tile of output
    D = o_ref.shape[-1]

    # Explicit cast to the weight dtype: keeps the first dot on the fast
    # native-bf16 MXU path when compute_dtype=bf16 (no f32xbf16 promotion).
    x = x_ref[...].astype(wcat_ref.dtype)

    # Fused matmul over the shared input x: columns [:D] = wrapped module,
    # columns [D:] = adapter down-projection.  f32 accumulation on the MXU.
    xw = jnp.dot(x, wcat_ref[...],
                 preferred_element_type=jnp.float32) + bcat_ref[...]

    y = xw[:, :D]                                         # module(x)
    h = jnp.maximum(xw[:, D:], 0.0)                       # relu(x @ W1 + b1)

    # Adapter up-projection (adapter_scale already folded into W2/b2).
    z = jnp.dot(h.astype(w2_ref.dtype), w2_ref[...],
                preferred_element_type=jnp.float32) + b2_ref[...]

    o_ref[...] = (y + z).astype(o_ref.dtype)


def prepare_params(params, compute_dtype=None):
    """Fuse Wm|W1, zero-pad H to a lane multiple, fold adapter_scale into W2/b2.

    Done once, outside the kernel.  Zero-padding the adapter hidden dim is
    exact (relu(0)=0 and padded W2 rows are 0), so results are unchanged.
    """
    scale = jnp.asarray(params["scale"], jnp.float32).reshape(-1)[0]
    D, H = params["w1"].shape
    Hp = max(_round_up(H, 128), 128)                                   # lane-aligned hidden

    w1 = jnp.pad(params["w1"], ((0, 0), (0, Hp - H)))                  # (D, Hp)
    b1 = jnp.pad(params["b1"], ((0, 0), (0, Hp - H)))                  # (1, Hp)
    w2s = jnp.pad(params["w2"] * scale, ((0, Hp - H), (0, 0)))         # (Hp, D)
    b2s = params["b2"] * scale                                         # (1, D)

    wcat = jnp.concatenate([params["wm"], w1], axis=1)                 # (D, D+Hp)
    bcat = jnp.concatenate([params["bm"], b1], axis=1)                 # (1, D+Hp)

    if compute_dtype is not None:
        wcat = wcat.astype(compute_dtype)
        w2s = w2s.astype(compute_dtype)
    # Biases stay f32: they are added to the f32 accumulator.
    return {
        "wcat": wcat,
        "bcat": bcat.astype(jnp.float32),
        "w2": w2s,
        "b2": b2s.astype(jnp.float32),
    }


def _pick_vmem_limit(footprint_bytes):
    """Size the scoped-VMEM limit from the real footprint, capped per chip."""
    try:
        cap = int(pltpu.get_tpu_info().vmem_capacity_bytes)
    except Exception:
        cap = 64 * 1024 * 1024                      # conservative (v7x per-TC)
    headroom = 8 * 1024 * 1024
    want = max(int(1.5 * footprint_bytes) + (2 << 20), 32 * 1024 * 1024)
    limit = min(want, cap - headroom)
    return max(limit, 16 * 1024 * 1024)


@functools.partial(jax.jit, static_argnames=("tm",))
def parallel_adapter(x, prepped, *, tm=512):
    """x: (B, S, D) -> (B, S, D)."""
    B, S, D = x.shape
    Hp = prepped["w2"].shape[0]                     # static (array shape), lane-aligned
    DH = D + Hp
    N = B * S

    # Row tile: multiple of 8 sublanes, no bigger than the (rounded) row count.
    TM = max(8, min(_round_up(tm, 8), _round_up(N, 8)))
    grid = (pl.cdiv(N, TM),)                        # no jnp.pad round-trip; boundary
                                                    # tile is masked by Pallas.

    x2 = x.reshape(N, D)

    w_item = jnp.dtype(prepped["wcat"].dtype).itemsize
    x_item = jnp.dtype(x.dtype).itemsize

    # VMEM footprint: single-buffered weights + double-buffered x/out tiles + temps.
    weight_bytes = (D * DH + Hp * D) * w_item + (DH + D) * 4
    stream_bytes = 2 * (2 * TM * D * x_item)
    temp_bytes = TM * DH * 4 + TM * Hp * w_item + TM * D * 4
    vmem_limit = _pick_vmem_limit(weight_bytes + stream_bytes + temp_bytes)

    cost = pl.CostEstimate(
        flops=2 * N * D * DH + 2 * N * Hp * D,
        transcendentals=0,
        bytes_accessed=2 * N * D * x_item + weight_bytes,
    )

    resident = pl.Buffered(1)                       # constant index_map -> 1 buffer

    out = pl.pallas_call(
        parallel_adapter_kernel,
        out_shape=jax.ShapeDtypeStruct((N, D), x.dtype),
        grid=grid,
        in_specs=[
            pl.BlockSpec((TM, D), lambda i: (i, 0)),                          # x, streamed
            pl.BlockSpec((D, DH), lambda i: (0, 0), pipeline_mode=resident),  # Wcat
            pl.BlockSpec((1, DH), lambda i: (0, 0), pipeline_mode=resident),  # bcat
            pl.BlockSpec((Hp, D), lambda i: (0, 0), pipeline_mode=resident),  # W2*scale
            pl.BlockSpec((1, D), lambda i: (0, 0), pipeline_mode=resident),   # b2*scale
        ],
        out_specs=pl.BlockSpec((TM, D), lambda i: (i, 0)),
        compiler_params=pltpu.CompilerParams(
            dimension_semantics=("parallel",),
            vmem_limit_bytes=vmem_limit,
        ),
        cost_estimate=cost,
    )(x2, prepped["wcat"], prepped["bcat"], prepped["w2"], prepped["b2"])

    return out.reshape(B, S, D)


def init_params(key, dim, downsample_factor=4, scaled=False):
    """Deterministic init mirroring Adapter.init_weights (normal std=0.001, clamped)."""
    H = dim // downsample_factor
    ks = jax.random.split(key, 6)
    std = 0.001

    def clamped_normal(k, shape, s):
        return jnp.clip(s * jax.random.normal(k, shape, jnp.float32), -2 * s, 2 * s)

    params = {
        # adapter Linear(dim, dim//df): weight std=0.001 clamped to +/- 2*std
        "w1": clamped_normal(ks[0], (dim, H), std),
        "b1": clamped_normal(ks[1], (1, H), std),
        # adapter Linear(dim//df, dim)
        "w2": clamped_normal(ks[2], (H, dim), std),
        "b2": clamped_normal(ks[3], (1, dim), std),
        # wrapped module chosen as Linear(dim, dim), synthetic deterministic init
        # TODO(synk): the wrapped `module` is arbitrary in PyTorch; a Linear stand-in is used here.
        "wm": 0.02 * jax.random.normal(ks[4], (dim, dim), jnp.float32),
        "bm": 0.02 * jax.random.normal(ks[5], (1, dim), jnp.float32),
        # scaled=False -> adapter_scale == 1 (python scalar in torch)
        "scale": jnp.ones((1,), jnp.float32),
    }
    return params


def parallel_adapter_ref(x, params):
    """Pure-JAX reference for correctness checking (unfused, no scale folding)."""
    B, S, D = x.shape
    x2 = x.reshape(B * S, D).astype(jnp.float32)
    y = x2 @ params["wm"] + params["bm"]
    h = jnp.maximum(x2 @ params["w1"] + params["b1"], 0.0)
    z = h @ params["w2"] + params["b2"]
    return (y + z * params["scale"][0]).reshape(B, S, D).astype(x.dtype)


if __name__ == "__main__":
    B, S, D, DF = 2, 8, 32, 4

    key = jax.random.PRNGKey(0)
    kx, kp = jax.random.split(key)
    x = jax.random.normal(kx, (B, S, D), jnp.float32)
    params = init_params(kp, D, downsample_factor=DF, scaled=False)

    # One-time param prep (fusion + H padding + scale folding).  Kept in f32 so
    # the check against the reference is tight; pass compute_dtype=jnp.bfloat16
    # for real model dims.
    prepped = prepare_params(params)

    # Small tile so the grid/pipelining path is actually exercised (grid=(2,)).
    out = parallel_adapter(x, prepped, tm=8)
    out = jax.block_until_ready(out)

    ref = parallel_adapter_ref(x, params)
    assert out.shape == (B, S, D)
    assert jnp.allclose(out, ref, atol=1e-5, rtol=1e-5)

    print("KERNEL_OK")
</pallas_src>

<mosaic_0001>
module attributes {stable_mosaic.version = 11 : i64} {
  func.func @parallel_adapter_kernel(%arg0: i32, %arg1: memref<8x32xf32, #tpu.memory_space<vmem>>, %arg2: memref<32x160xf32, #tpu.memory_space<vmem>>, %arg3: memref<1x160xf32, #tpu.memory_space<vmem>>, %arg4: memref<128x32xf32, #tpu.memory_space<vmem>>, %arg5: memref<1x32xf32, #tpu.memory_space<vmem>>, %arg6: memref<8x32xf32, #tpu.memory_space<vmem>>) attributes {dimension_semantics = [#tpu.dimension_semantics<parallel>], iteration_bounds = array<i64: 2>, scalar_prefetch = 0 : i64, scratch_operands = 0 : i64, tpu.core_type = #tpu.core_type<tc>, window_params = [{transform_indices = @transform_0, window_bounds = array<i64: 8, 32>}, {pipeline_mode = #tpu.pipeline_mode<synchronous>, transform_indices = @transform_1, window_bounds = array<i64: 32, 160>}, {pipeline_mode = #tpu.pipeline_mode<synchronous>, transform_indices = @transform_2, window_bounds = array<i64: 1, 160>}, {pipeline_mode = #tpu.pipeline_mode<synchronous>, transform_indices = @transform_3, window_bounds = array<i64: 128, 32>}, {pipeline_mode = #tpu.pipeline_mode<synchronous>, transform_indices = @transform_4, window_bounds = array<i64: 1, 32>}, {transform_indices = @transform_5, window_bounds = array<i64: 8, 32>}]} {
    %c0 = arith.constant 0 : index
    %c0_0 = arith.constant 0 : index
    %0 = vector.load %arg1[%c0, %c0_0] : memref<8x32xf32, #tpu.memory_space<vmem>>, vector<8x32xf32>
    %c0_1 = arith.constant 0 : index
    %c0_2 = arith.constant 0 : index
    %1 = vector.load %arg2[%c0_1, %c0_2] : memref<32x160xf32, #tpu.memory_space<vmem>>, vector<32x160xf32>
    %cst = arith.constant dense<0.000000e+00> : vector<8x160xf32>
    %2 = tpu.matmul %0, %1, %cst {dimension_numbers = #tpu.dot_dimension_numbers<[1], [0], [0], [1], [0, 0, 1, 1], [], []>} : vector<8x32xf32>, vector<32x160xf32>, vector<8x160xf32> -> vector<8x160xf32>
    %c0_3 = arith.constant 0 : index
    %c0_4 = arith.constant 0 : index
    %3 = vector.load %arg3[%c0_3, %c0_4] : memref<1x160xf32, #tpu.memory_space<vmem>>, vector<1x160xf32>
    %4 = vector.broadcast %3 : vector<1x160xf32> to vector<8x160xf32>
    %5 = arith.addf %2, %4 : vector<8x160xf32>
    %6 = vector.extract_strided_slice %5 {offsets = [0, 0], sizes = [8, 32], strides = [1, 1]} : vector<8x160xf32> to vector<8x32xf32>
    %7 = vector.extract_strided_slice %5 {offsets = [0, 32], sizes = [8, 128], strides = [1, 1]} : vector<8x160xf32> to vector<8x128xf32>
    %cst_5 = arith.constant 0.000000e+00 : f32
    %8 = vector.broadcast %cst_5 : f32 to vector<8x128xf32>
    %9 = arith.maximumf %7, %8 : vector<8x128xf32>
    %c0_6 = arith.constant 0 : index
    %c0_7 = arith.constant 0 : index
    %10 = vector.load %arg4[%c0_6, %c0_7] : memref<128x32xf32, #tpu.memory_space<vmem>>, vector<128x32xf32>
    %cst_8 = arith.constant dense<0.000000e+00> : vector<8x32xf32>
    %11 = tpu.matmul %9, %10, %cst_8 {dimension_numbers = #tpu.dot_dimension_numbers<[1], [0], [0], [1], [0, 0, 1, 1], [], []>} : vector<8x128xf32>, vector<128x32xf32>, vector<8x32xf32> -> vector<8x32xf32>
    %c0_9 = arith.constant 0 : index
    %c0_10 = arith.constant 0 : index
    %12 = vector.load %arg5[%c0_9, %c0_10] : memref<1x32xf32, #tpu.memory_space<vmem>>, vector<1x32xf32>
    %13 = vector.broadcast %12 : vector<1x32xf32> to vector<8x32xf32>
    %14 = arith.addf %11, %13 : vector<8x32xf32>
    %15 = arith.addf %6, %14 : vector<8x32xf32>
    %c0_11 = arith.constant 0 : index
    %c0_12 = arith.constant 0 : index
    %16 = vector.load %arg6[%c0_11, %c0_12] : memref<8x32xf32, #tpu.memory_space<vmem>>, vector<8x32xf32>
    tpu.vector_store %arg6[%c0_11, %c0_12], %15 {strides = array<i32>} : memref<8x32xf32, #tpu.memory_space<vmem>>, vector<8x32xf32>,
    return
  }
  func.func @transform_0(%arg0: i32) -> (i32, i32) {
    %c0_i32 = arith.constant 0 : i32
    %c0_i32_0 = arith.constant 0 : i32
    return %arg0, %c0_i32 : i32, i32
  }
  func.func @transform_1(%arg0: i32) -> (i32, i32) {
    %c0_i32 = arith.constant 0 : i32
    %c0_i32_0 = arith.constant 0 : i32
    %c0_i32_1 = arith.constant 0 : i32
    return %c0_i32, %c0_i32_0 : i32, i32
  }
  func.func @transform_2(%arg0: i32) -> (i32, i32) {
    %c0_i32 = arith.constant 0 : i32
    %c0_i32_0 = arith.constant 0 : i32
    %c0_i32_1 = arith.constant 0 : i32
    return %c0_i32, %c0_i32_0 : i32, i32
  }
  func.func @transform_3(%arg0: i32) -> (i32, i32) {
    %c0_i32 = arith.constant 0 : i32
    %c0_i32_0 = arith.constant 0 : i32
    %c0_i32_1 = arith.constant 0 : i32
    return %c0_i32, %c0_i32_0 : i32, i32
  }
  func.func @transform_4(%arg0: i32) -> (i32, i32) {
    %c0_i32 = arith.constant 0 : i32
    %c0_i32_0 = arith.constant 0 : i32
    %c0_i32_1 = arith.constant 0 : i32
    return %c0_i32, %c0_i32_0 : i32, i32
  }
  func.func @transform_5(%arg0: i32) -> (i32, i32) {
    %c0_i32 = arith.constant 0 : i32
    %c0_i32_0 = arith.constant 0 : i32
    return %arg0, %c0_i32 : i32, i32
  }
}

</mosaic_0001>

<llo_original>
// kernel: parallel_adapter.1
$region0: #{parallel_adapter.1}
  #allocation0 [shape = 'u32[]', space=smem, size = 0x4, offset = 0x4, fixed_abs, tag = 'smem constant byte address 0x4 - core index']
  #allocation1 [shape = 'u32[144,128]{1,0:T(1,128)}', space=vmem, size = 0x12000, scoped, tag = 'internal scratch']
  %s0 = inlined_call_operand.vmem [shape: f32[16,32], index: 0, kind: input, shape index: {}]
  %s1 = inlined_call_operand.vmem [shape: f32[32,160], index: 1, kind: input, shape index: {}]
  %s2 = inlined_call_operand.vmem [shape: f32[1,160], index: 2, kind: input, shape index: {}]
  %s3 = inlined_call_operand.vmem [shape: f32[128,32], index: 3, kind: input, shape index: {}]
  %s4 = inlined_call_operand.vmem [shape: f32[1,32], index: 4, kind: input, shape index: {}]
  %s5 = inlined_call_operand.hbm [shape: f32[16,32], index: 5, kind: output, shape index: {}]
  %s6 = sld [smem:[#allocation0]]
  $region53: #{parallel_adapter.1} parent=0
    _
  %s8 = ssub.s32 1, %s6
  %s9 = scalar_select 0, %s8, %s6
  $region1: #{parallel_adapter.1} parent=0
    #allocation2 [shape = 'u8[8192]{0}', space=vmem, size = 0x2000, scoped, tag = 'output window, operand 0']
    #allocation3 [shape = 's32[2]{0}', space=sflag, size = 0x8, scoped, tag = 'scoped memory for parallel_adapter.1']
    %10 = vsyncpa [#allocation3], 0
    %s11 = scalar_lea.sflag [#allocation3], 1
    %12 = vsyncpa %s11, 0
    loop: start=0, step=1, limit=4
    $region2: #{parallel_adapter.1} parent=1 // loop_pre_header
      _
    $region3: #{parallel_adapter.1} parent=1 // loop_header
      %s14 = sphi 0, %s18
      %p15 = scmp.ge.s32.totalorder %s14, 4
      %s24 = sphi 0, %s26
      %s27 = sphi 0, %s24
      %s28 = sphi 0, %s27
      %s44 = sphi 0, %s28
      %s48 = sphi 0, %s48
      %s50 = sphi 0, %s48
      %s51 = sphi 0, %s50
      %s65 = sphi 0, %s51
      %s69 = sphi 0, %s69
      %s71 = sphi 0, %s69
      %s72 = sphi 0, %s71
      %s86 = sphi 0, %s72
      %s90 = sphi 0, %s90
      %s92 = sphi 0, %s90
      %s93 = sphi 0, %s92
      %s107 = sphi 0, %s93
      %s111 = sphi 0, %s111
      %s113 = sphi 0, %s111
      %s114 = sphi 0, %s113
      %s128 = sphi 0, %s114
      %s134 = sphi 0, %s136
      %s137 = sphi 0, %s134
      %s138 = sphi 0, %s137
      %s154 = sphi 0, %s138
    $region4: #{parallel_adapter.1} parent=1 // loop_header_branch
      %17 = sbr.rel (%p15) target = $region8
    $region5: #{parallel_adapter.1} parent=1 // loop_body
      %s19 = ssub.s32 %s14, 1
      %s20 = ssub.s32 %s14, 2
      %s21 = sadd.s32 %s14, 1
      %s22 = ssub.s32 %s14, %s21
      %p23 = scmp.eq.s32.totalorder %s22, 0
      %s25 = sadd.s32 %s24, 1
      %s26 = scalar_select %p23, %s24, %s25
      %p29 = pneg %p23
      %p30 = scmp.eq.s32.totalorder %s14, 1
      %p31 = por %p29, %p30
      %p32 = scmp.ne.s32.totalorder %s24, %s27
      %p33 = scmp.eq.s32.totalorder %s14, 0
      %p34 = por %p32, %p33
      %p35 = scmp.ne.s32.totalorder %s24, %s27
      %p36 = scmp.eq.s32.totalorder %s19, 1
      %p37 = por %p35, %p36
      %p38 = scmp.ne.s32.totalorder %s27, %s28
      %p39 = scmp.eq.s32.totalorder %s19, 0
      %p40 = por %p38, %p39
      %p41 = scmp.ne.s32.totalorder %s27, %s28
      %p42 = scmp.eq.s32.totalorder %s20, 1
      %p43 = por %p41, %p42
      %p45 = scmp.ne.s32.totalorder %s28, %s44
      %p46 = scmp.eq.s32.totalorder %s20, 0
      %p47 = por %p45, %p46
      %s49 = sadd.s32 %s48, 1
      %p52 = scmp.eq.s32.totalorder %s14, 1
      %p53 = scmp.ne.s32.totalorder %s48, %s50
      %p54 = scmp.eq.s32.totalorder %s14, 0
      %p55 = por %p53, %p54
      %p56 = scmp.ne.s32.totalorder %s48, %s50
      %p57 = scmp.eq.s32.totalorder %s19, 1
      %p58 = por %p56, %p57
      %p59 = scmp.ne.s32.totalorder %s50, %s51
      %p60 = scmp.eq.s32.totalorder %s19, 0
      %p61 = por %p59, %p60
      %p62 = scmp.ne.s32.totalorder %s50, %s51
      %p63 = scmp.eq.s32.totalorder %s20, 1
      %p64 = por %p62, %p63
      %p66 = scmp.ne.s32.totalorder %s51, %s65
      %p67 = scmp.eq.s32.totalorder %s20, 0
      %p68 = por %p66, %p67
      %s70 = sadd.s32 %s69, 1
      %p73 = scmp.eq.s32.totalorder %s14, 1
      %p74 = scmp.ne.s32.totalorder %s69, %s71
      %p75 = scmp.eq.s32.totalorder %s14, 0
      %p76 = por %p74, %p75
      %p77 = scmp.ne.s32.totalorder %s69, %s71
      %p78 = scmp.eq.s32.totalorder %s19, 1
      %p79 = por %p77, %p78
      %p80 = scmp.ne.s32.totalorder %s71, %s72
      %p81 = scmp.eq.s32.totalorder %s19, 0
      %p82 = por %p80, %p81
      %p83 = scmp.ne.s32.totalorder %s71, %s72
      %p84 = scmp.eq.s32.totalorder %s20, 1
      %p85 = por %p83, %p84
      %p87 = scmp.ne.s32.totalorder %s72, %s86
      %p88 = scmp.eq.s32.totalorder %s20, 0
      %p89 = por %p87, %p88
      %s91 = sadd.s32 %s90, 1
      %p94 = scmp.eq.s32.totalorder %s14, 1
      %p95 = scmp.ne.s32.totalorder %s90, %s92
      %p96 = scmp.eq.s32.totalorder %s14, 0
      %p97 = por %p95, %p96
      %p98 = scmp.ne.s32.totalorder %s90, %s92
      %p99 = scmp.eq.s32.totalorder %s19, 1
      %p100 = por %p98, %p99
      %p101 = scmp.ne.s32.totalorder %s92, %s93
      %p102 = scmp.eq.s32.totalorder %s19, 0
      %p103 = por %p101, %p102
      %p104 = scmp.ne.s32.totalorder %s92, %s93
      %p105 = scmp.eq.s32.totalorder %s20, 1
      %p106 = por %p104, %p105
      %p108 = scmp.ne.s32.totalorder %s93, %s107
      %p109 = scmp.eq.s32.totalorder %s20, 0
      %p110 = por %p108, %p109
      %s112 = sadd.s32 %s111, 1
      %p115 = scmp.eq.s32.totalorder %s14, 1
      %p116 = scmp.ne.s32.totalorder %s111, %s113
      %p117 = scmp.eq.s32.totalorder %s14, 0
      %p118 = por %p116, %p117
      %p119 = scmp.ne.s32.totalorder %s111, %s113
      %p120 = scmp.eq.s32.totalorder %s19, 1
      %p121 = por %p119, %p120
      %p122 = scmp.ne.s32.totalorder %s113, %s114
      %p123 = scmp.eq.s32.totalorder %s19, 0
      %p124 = por %p122, %p123
      %p125 = scmp.ne.s32.totalorder %s113, %s114
      %p126 = scmp.eq.s32.totalorder %s20, 1
      %p127 = por %p125, %p126
      %p129 = scmp.ne.s32.totalorder %s114, %s128
      %p130 = scmp.eq.s32.totalorder %s20, 0
      %p131 = por %p129, %p130
      %s132 = ssub.s32 %s14, %s21
      %p133 = scmp.eq.s32.totalorder %s132, 0
      %s135 = sadd.s32 %s134, 1
      %s136 = scalar_select %p133, %s134, %s135
      %p139 = pneg %p133
      %p140 = scmp.eq.s32.totalorder %s14, 1
      %p141 = por %p139, %p140
      %p142 = scmp.ne.s32.totalorder %s134, %s137
      %p143 = scmp.eq.s32.totalorder %s14, 0
      %p144 = por %p142, %p143
      %p145 = scmp.ne.s32.totalorder %s134, %s137
      %p146 = scmp.eq.s32.totalorder %s19, 1
      %p147 = por %p145, %p146
      %p148 = scmp.ne.s32.totalorder %s137, %s138
      %p149 = scmp.eq.s32.totalorder %s19, 0
      %p150 = por %p148, %p149
      %p151 = scmp.ne.s32.totalorder %s137, %s138
      %p152 = scmp.eq.s32.totalorder %s20, 1
      %p153 = por %p151, %p152
      %p155 = scmp.ne.s32.totalorder %s138, %s154
      %p156 = scmp.eq.s32.totalorder %s20, 0
      %p157 = por %p155, %p156
      %p158 = scmp.le.s32.totalorder 1, %s14
      %p159 = scmp.lt.s32.totalorder %s14, 3
      %p160 = pnand %p158, %p159
      %p161 = pneg %p160
      // Predicated region
      $region9: #{parallel_adapter.1} parent=5 // pred_check
        _
      $region10: #{parallel_adapter.1} parent=5 // pred_check_branch
        %163 = sbr.rel (%p160) target = $region12
      $region11: #{parallel_adapter.1} parent=5 // pred_region
        %s164 = ssub.s32 %s14, 1
        // Predicated region
        $region13: #{parallel_adapter.1} parent=11 // pred_check
          %p165 = pneg %p61
        $region14: #{parallel_adapter.1} parent=11 // pred_check_branch
          %167 = sbr.rel (%p165) target = $region16
        $region15: #{parallel_adapter.1} parent=11 // pred_region
          _
        $region16: #{parallel_adapter.1} parent=11 // pred_fallthru
          _
        // Predicated region
        $region17: #{parallel_adapter.1} parent=11 // pred_check
          %p168 = pneg %p82
        $region18: #{parallel_adapter.1} parent=11 // pred_check_branch
          %170 = sbr.rel (%p168) target = $region20
        $region19: #{parallel_adapter.1} parent=11 // pred_region
          _
        $region20: #{parallel_adapter.1} parent=11 // pred_fallthru
          _
        // Predicated region
        $region21: #{parallel_adapter.1} parent=11 // pred_check
          %p171 = pneg %p103
        $region22: #{parallel_adapter.1} parent=11 // pred_check_branch
          %173 = sbr.rel (%p171) target = $region24
        $region23: #{parallel_adapter.1} parent=11 // pred_region
          _
        $region24: #{parallel_adapter.1} parent=11 // pred_fallthru
          _
        // Predicated region
        $region25: #{parallel_adapter.1} parent=11 // pred_check
          %p174 = pneg %p124
        $region26: #{parallel_adapter.1} parent=11 // pred_check_branch
          %176 = sbr.rel (%p174) target = $region28
        $region27: #{parallel_adapter.1} parent=11 // pred_region
          _
        $region28: #{parallel_adapter.1} parent=11 // pred_fallthru
          _
      $region12: #{parallel_adapter.1} parent=5 // pred_fallthru
        _
      %p177 = scmp.lt.s32.totalorder %s14, 2
      // Predicated region
      $region29: #{parallel_adapter.1} parent=5 // pred_check
        %p178 = pneg %p177
      $region30: #{parallel_adapter.1} parent=5 // pred_check_branch
        %180 = sbr.rel (%p178) target = $region32
      $region31: #{parallel_adapter.1} parent=5 // pred_region
        // Predicated region
        $region33: #{parallel_adapter.1} parent=31 // pred_check
          %p181 = pneg %p34
        $region34: #{parallel_adapter.1} parent=31 // pred_check_branch
          %183 = sbr.rel (%p181) target = $region36
        $region35: #{parallel_adapter.1} parent=31 // pred_region
          %p184 = scmp.lt.s32.totalorder %s14, 1
          %s185 = scalar_select %p184, %s14, 1
          %s186 = smul.addr %s185, 8
          %s187 = scalar_lea.vmem %s0, %s186
        $region36: #{parallel_adapter.1} parent=31 // pred_fallthru
          _
      $region32: #{parallel_adapter.1} parent=5 // pred_fallthru
        _
      %p188 = scmp.le.s32.totalorder 1, %s14
      %p189 = scmp.lt.s32.totalorder %s14, 3
      %p190 = pnand %p188, %p189
      %p191 = pneg %p190
      // Predicated region
      $region37: #{parallel_adapter.1} parent=5 // pred_check
        _
      $region38: #{parallel_adapter.1} parent=5 // pred_check_branch
        %193 = sbr.rel (%p190) target = $region40
      $region39: #{parallel_adapter.1} parent=5 // pred_region
        %s194 = ssub.s32 %s14, 1
        %p195 = scmp.lt.s32.totalorder %s19, 1
        %s196 = scalar_select %p195, %s19, 1
        %s197 = smul.addr %s196, 8
        %s198 = scalar_lea.vmem %s0, %s197
        %p199 = pneg %p40
        %p200 = pneg %p37
        %p201 = pneg %p61
        %p202 = pneg %p58
        %p203 = pneg %p82
        %p204 = pneg %p79
        %p205 = pneg %p103
        %p206 = pneg %p100
        %p207 = pneg %p124
        %p208 = pneg %p121
        %p209 = pneg %p150
        %p210 = pneg %p147
        %s211 = sand.u32 %s137, 1
        %s212 = scalar_lea.sflag [#allocation3], %s211
        %s213 = sand.u32 %s137, 1
        %s214 = smul.addr %s213, 8
        %s215 = scalar_lea.vmem [#allocation2], %s214
        %p216 = scmp.lt.s32.totalorder %s19, 1
        %s217 = scalar_select %p216, %s19, 1
        %s218 = smul.addr %s217, 8
        %s219 = scalar_lea.vmem %s0, %s218
        %v220 = vld [vmem:[%s219] sm:$0xff]
        %v221 = vld [vmem:[%s1] sm:$0xff]
        %v222 = vld [vmem:[%s1 + $0x8] sm:$0xff]
        %v223 = vld [vmem:[%s1 + $0x10] sm:$0xff]
        %v224 = vld [vmem:[%s1 + $0x18] sm:$0xff]
        %v225 = vld [vmem:[%s1 + $0x20] sm:$0xff]
        %v226 = vld [vmem:[%s1 + $0x28] sm:$0xff]
        %v227 = vld [vmem:[%s1 + $0x30] sm:$0xff]
        %v228 = vld [vmem:[%s1 + $0x38] sm:$0xff]
        %v229 = vld [vmem:[%s2] sm:$0x3]
        %v231 = vlaneseq
        %v232 = vshrl.u32 %v231, 7
        %v233 = vsub.s32 0, %v232
        %v234 = vrot.slane %v229, %v233
        %v235 = vlaneseq
        %v236 = vshrl.u32 %v235, 7
        %v237 = vsub.s32 1, %v236
        %v238 = vrot.slane %v229, %v237
        %vm241 = vcmask 261120
        %v243 = vsel %vm241, %v220, 0
        %245 = vmatprep.subr.mxu0 0.0
        %246 = vmatpush1.msra.mxu0 0.0
        %247 = vmatprep.subr.mxu0 0.0
        %248 = vmatpush1.msra.mxu0 0.0
        %249 = vmatprep.subr.mxu0 0.0
        %250 = vmatpush1.msra.mxu0 0.0
        %251 = vmatprep.subr.mxu0 0.0
        %252 = vmatpush1.msra.mxu0 0.0
        %253 = vmatprep.subr.mxu0 0.0
        %254 = vmatpush1.msra.mxu0 0.0
        %255 = vmatprep.subr.mxu0 0.0
        %256 = vmatpush1.msra.mxu0 0.0
        %257 = vmatprep.subr.mxu0 0.0
        %258 = vmatpush1.msra.mxu0 0.0
        %259 = vmatprep.subr.mxu0 0.0
        %260 = vmatpush1.msra.mxu0 0.0
        %261 = vmatprep.subr.mxu0 0.0
        %262 = vmatpush1.msra.mxu0 0.0
        %263 = vmatprep.subr.mxu0 0.0
        %264 = vmatpush1.msra.mxu0 0.0
        %265 = vmatprep.subr.mxu0 0.0
        %266 = vmatpush1.msra.mxu0 0.0
        %267 = vmatprep.subr.mxu0 0.0
        %268 = vmatpush1.msra.mxu0 0.0
        %269 = vmatprep.subr.mxu0 %v228
        %270 = vmatpush1.msra.mxu0 %v227
        %271 = vmatprep.subr.mxu0 %v226
        %272 = vmatpush1.msra.mxu0 %v225
        %273 = vmatprep.subr.mxu0 %v224
        %274 = vmatpush1.msra.mxu0 %v223
        %275 = vmatprep.subr.mxu0 %v222
        %276 = vmatpush1.msra.mxu0 %v221
        %277 = vmatprep.subr.mxu0 0.0
        %278 = vmatpush2.msra.mxu0 0.0
        %279 = vmatprep.subr.mxu0 0.0
        %280 = vmatpush2.msra.mxu0 0.0
        %281 = vmatprep.subr.mxu0 0.0
        %282 = vmatpush2.msra.mxu0 0.0
        %283 = vmatprep.subr.mxu0 0.0
        %284 = vmatpush2.msra.mxu0 0.0
        %285 = vmatprep.subr.mxu0 0.0
        %286 = vmatpush2.msra.mxu0 0.0
        %287 = vmatprep.subr.mxu0 0.0
        %288 = vmatpush2.msra.mxu0 0.0
        %289 = vmatprep.subr.mxu0 0.0
        %290 = vmatpush2.msra.mxu0 0.0
        %291 = vmatprep.subr.mxu0 0.0
        %292 = vmatpush2.msra.mxu0 0.0
        %293 = vmatprep.subr.mxu0 0.0
        %294 = vmatpush2.msra.mxu0 0.0
        %295 = vmatprep.subr.mxu0 0.0
        %296 = vmatpush2.msra.mxu0 0.0
        %297 = vmatprep.subr.mxu0 0.0
        %298 = vmatpush2.msra.mxu0 0.0
        %299 = vmatprep.subr.mxu0 0.0
        %300 = vmatpush2.msra.mxu0 0.0
        %301 = vmatprep.subr.mxu0 0.0
        %302 = vmatpush2.msra.mxu0 0.0
        %303 = vmatprep.subr.mxu0 0.0
        %304 = vmatpush2.msra.mxu0 0.0
        %305 = vmatprep.subr.mxu0 0.0
        %306 = vmatpush2.msra.mxu0 0.0
        %307 = vmatprep.subr.mxu0 0.0
        %308 = vmatpush2.msra.mxu0 0.0
        %309 = vmatprep.mubr.f32.mxu0 0.0
        %310 = vmatmul.mubr.f32.gmra.mxu0 %v243
        %v311 = vpop.f32.mrf.mxu0
        %v312 = vadd.f32 %v234, %v311
        %v313 = vpop.f32.mrf.mxu0
        %v314 = vadd.f32 %v238, %v313
        %315 = vdwg.mxu0
        %v316 = vmax.f32 %v312, 0.0
        %v317 = vmax.f32 %v314, 0.0
        %v318 = vld [vmem:[%s3] sm:$0xff]
        %v319 = vld [vmem:[%s3 + $0x8] sm:$0xff]
        %v320 = vld [vmem:[%s3 + $0x10] sm:$0xff]
        %v321 = vld [vmem:[%s3 + $0x18] sm:$0xff]
        %v322 = vld [vmem:[%s3 + $0x20] sm:$0xff]
        %v323 = vld [vmem:[%s3 + $0x28] sm:$0xff]
        %v324 = vld [vmem:[%s3 + $0x30] sm:$0xff]
        %v325 = vld [vmem:[%s3 + $0x38] sm:$0xff]
        %v326 = vld [vmem:[%s3 + $0x40] sm:$0xff]
        %v327 = vld [vmem:[%s3 + $0x48] sm:$0xff]
        %v328 = vld [vmem:[%s3 + $0x50] sm:$0xff]
        %v329 = vld [vmem:[%s3 + $0x58] sm:$0xff]
        %v330 = vld [vmem:[%s3 + $0x60] sm:$0xff]
        %v331 = vld [vmem:[%s3 + $0x68] sm:$0xff]
        %v332 = vld [vmem:[%s3 + $0x70] sm:$0xff]
        %v333 = vld [vmem:[%s3 + $0x78] sm:$0xff]
        %v334 = vld [vmem:[%s4] sm:$0x1]
        %v336 = vlaneseq
        %v337 = vshrl.u32 %v336, 7
        %v338 = vsub.s32 0, %v337
        %v339 = vrot.slane %v334, %v338
        %343 = vrot.lane.b32.xlu0 %v316, 96
        %v344 = vpop.permute.xlu0 %343
        %345 = vrot.lane.b32.xlu0 %v317, 96
        %v346 = vpop.permute.xlu0 %345
        %vm347 = vcmask 785408
        %v348 = vsel %vm347, %v344, %v346
        %350 = vmatprep.subr.mxu0 0.0
        %351 = vmatpush1.msra.mxu0 %v333
        %352 = vmatprep.subr.mxu0 0.0
        %353 = vmatpush1.msra.mxu0 %v332
        %354 = vmatprep.subr.mxu0 0.0
        %355 = vmatpush1.msra.mxu0 %v331
        %356 = vmatprep.subr.mxu0 0.0
        %357 = vmatpush1.msra.mxu0 %v330
        %358 = vmatprep.subr.mxu0 0.0
        %359 = vmatpush1.msra.mxu0 %v329
        %360 = vmatprep.subr.mxu0 0.0
        %361 = vmatpush1.msra.mxu0 %v328
        %362 = vmatprep.subr.mxu0 0.0
        %363 = vmatpush1.msra.mxu0 %v327
        %364 = vmatprep.subr.mxu0 0.0
        %365 = vmatpush1.msra.mxu0 %v326
        %366 = vmatprep.subr.mxu0 0.0
        %367 = vmatpush1.msra.mxu0 %v325
        %368 = vmatprep.subr.mxu0 0.0
        %369 = vmatpush1.msra.mxu0 %v324
        %370 = vmatprep.subr.mxu0 0.0
        %371 = vmatpush1.msra.mxu0 %v323
        %372 = vmatprep.subr.mxu0 0.0
        %373 = vmatpush1.msra.mxu0 %v322
        %374 = vmatprep.subr.mxu0 0.0
        %375 = vmatpush1.msra.mxu0 %v321
        %376 = vmatprep.subr.mxu0 0.0
        %377 = vmatpush1.msra.mxu0 %v320
        %378 = vmatprep.subr.mxu0 0.0
        %379 = vmatpush1.msra.mxu0 %v319
        %380 = vmatprep.subr.mxu0 0.0
        %381 = vmatpush1.msra.mxu0 %v318
        %382 = vmatprep.subr.mxu0 0.0
        %383 = vmatpush2.msra.mxu0 0.0
        %384 = vmatprep.subr.mxu0 0.0
        %385 = vmatpush2.msra.mxu0 0.0
        %386 = vmatprep.subr.mxu0 0.0
        %387 = vmatpush2.msra.mxu0 0.0
        %388 = vmatprep.subr.mxu0 0.0
        %389 = vmatpush2.msra.mxu0 0.0
        %390 = vmatprep.subr.mxu0 0.0
        %391 = vmatpush2.msra.mxu0 0.0
        %392 = vmatprep.subr.mxu0 0.0
        %393 = vmatpush2.msra.mxu0 0.0
        %394 = vmatprep.subr.mxu0 0.0
        %395 = vmatpush2.msra.mxu0 0.0
        %396 = vmatprep.subr.mxu0 0.0
        %397 = vmatpush2.msra.mxu0 0.0
        %398 = vmatprep.subr.mxu0 0.0
        %399 = vmatpush2.msra.mxu0 0.0
        %400 = vmatprep.subr.mxu0 0.0
        %401 = vmatpush2.msra.mxu0 0.0
        %402 = vmatprep.subr.mxu0 0.0
        %403 = vmatpush2.msra.mxu0 0.0
        %404 = vmatprep.subr.mxu0 0.0
        %405 = vmatpush2.msra.mxu0 0.0
        %406 = vmatprep.subr.mxu0 0.0
        %407 = vmatpush2.msra.mxu0 0.0
        %408 = vmatprep.subr.mxu0 0.0
        %409 = vmatpush2.msra.mxu0 0.0
        %410 = vmatprep.subr.mxu0 0.0
        %411 = vmatpush2.msra.mxu0 0.0
        %412 = vmatprep.subr.mxu0 0.0
        %413 = vmatpush2.msra.mxu0 0.0
        %414 = vmatprep.mubr.f32.mxu0 0.0
        %415 = vmatmul.mubr.f32.gmra.mxu0 %v348
        %v416 = vpop.f32.mrf.mxu0
        %v417 = vadd.f32 %v339, %v416
        %v418 = vpop.f32.mrf.mxu0
        %419 = vdwg.mxu0
        %v420 = vadd.f32 %v312, %v417
        %421 = vst.msk [vmem:[%s215] sm:$0xff] %vm241, %v420
        %s422 = sand.u32 %s137, 1
        %s423 = scalar_lea.sflag [#allocation3], %s422
        %s424 = sand.u32 %s137, 1
        %s425 = smul.addr %s424, 8
        %s426 = scalar_lea.vmem [#allocation2], %s425
        // Predicated region
        $region41: #{parallel_adapter.1} parent=39 // pred_check
          %p427 = pneg %p147
        $region42: #{parallel_adapter.1} parent=39 // pred_check_branch
          %429 = sbr.rel (%p427) target = $region44
        $region43: #{parallel_adapter.1} parent=39 // pred_region
          %s431 = ssub.s32 128, 128
          %432 = vsyncadd %s423, %s431
          %s433 = smul.addr %s19, 128
          %s434 = scalar_lea.hbm %s5, %s433
          %s436 = sshll.u32 %s426, 4
          %s437 = int_to_ptr.vmem [resolvable:$true] %s436
          %439 = dma.vmem_to_hbm [thread:$0]  %s437, 128, %s434, %s423
        $region44: #{parallel_adapter.1} parent=39 // pred_fallthru
          _
      $region40: #{parallel_adapter.1} parent=5 // pred_fallthru
        _
      %p440 = scmp.le.s32.totalorder 2, %s14
      // Predicated region
      $region45: #{parallel_adapter.1} parent=5 // pred_check
        %p441 = pneg %p440
      $region46: #{parallel_adapter.1} parent=5 // pred_check_branch
        %443 = sbr.rel (%p441) target = $region48
      $region47: #{parallel_adapter.1} parent=5 // pred_region
        %s444 = ssub.s32 %s14, 2
        // Predicated region
        $region49: #{parallel_adapter.1} parent=47 // pred_check
          %p445 = pneg %p153
        $region50: #{parallel_adapter.1} parent=47 // pred_check_branch
          %447 = sbr.rel (%p445) target = $region52
        $region51: #{parallel_adapter.1} parent=47 // pred_region
          %s448 = sand.u32 %s138, 1
          %s449 = scalar_lea.sflag [#allocation3], %s448
          %s450 = sand.u32 %s138, 1
          %s451 = smul.addr %s450, 8
          %s452 = scalar_lea.vmem [#allocation2], %s451
          %453 = dma.done %s449, 128
        $region52: #{parallel_adapter.1} parent=47 // pred_fallthru
          _
      $region48: #{parallel_adapter.1} parent=5 // pred_fallthru
        _
    $region6: #{parallel_adapter.1} parent=1 // loop_footer
      %s18 = sadd.s32 1, %s14
    $region7: #{parallel_adapter.1} parent=1 // loop_footer_branch
      %13 = sbr.rel target = $region3
    $region8: #{parallel_adapter.1} parent=1 // loop_exit
      _
    %454 = vsyncpa [#allocation3], 1
    %s455 = scalar_lea.sflag [#allocation3], 1
    %456 = vsyncpa %s455, 1

</llo_original>
